<compile_context>
chip_gen: v5e
topology: v5e:2x2
jax: 0.10.0
libtpu: 0.0.40
codegen_flags: <defaults>
</compile_context>

<pallas_src>
import functools

import jax
import jax.numpy as jnp
from jax.experimental import pallas as pl
from jax.experimental.pallas import tpu as pltpu

LANE = 128


def _round_up(a, m):
    return (a + m - 1) // m * m


# ------------------------------ kernel ------------------------------

def vae_kernel(x_ref, eps_ref,
               w1_ref, b1_ref, w2_ref, b2_ref, wh_ref, bh_ref,
               dw1_ref, db1_ref, dw2_ref, db2_ref, dw3_ref, db3_ref,
               xhat_ref, head_ref, *, mu_pad):
    f32 = jnp.float32
    bf16 = jnp.bfloat16

    # ---- encoder: cat([x, y]) already folded into the x slab (y rides at lane in_x) ----
    x = x_ref[...]                                               # (TB, IN_PAD) bf16
    h1 = jnp.dot(x, w1_ref[...], preferred_element_type=f32) + b1_ref[...]
    h1 = jnp.maximum(h1, 0.0)
    h2 = jnp.dot(h1.astype(bf16), w2_ref[...], preferred_element_type=f32) + b2_ref[...]
    h2 = jnp.maximum(h2, 0.0)

    # ---- fused mu|logvar head: (TB, 2*mu_pad) = [mu slab | logvar slab] ----
    head = jnp.dot(h2.astype(bf16), wh_ref[...], preferred_element_type=f32) + bh_ref[...]
    head_ref[...] = head

    mu_slab = head[:, :mu_pad]        # vreg-aligned 128-lane slab (lanes >= L exactly 0)
    logvar_slab = head[:, mu_pad:]    # vreg-aligned 128-lane slab (lanes >= L exactly 0)

    # ---- reparameterize + fold y: eps slab = [eps | y | 0 ...] -> z slab = [z | y | 0 ...] ----
    eps = eps_ref[...].astype(f32)    # (TB, Z_PAD = mu_pad)
    z_slab = mu_slab + eps * jnp.exp(0.5 * logvar_slab)

    # ---- decoder (single full-K matmuls, all lane-dense) ----
    d1 = jnp.dot(z_slab.astype(bf16), dw1_ref[...], preferred_element_type=f32) + db1_ref[...]
    d1 = jnp.maximum(d1, 0.0)
    d2 = jnp.dot(d1.astype(bf16), dw2_ref[...], preferred_element_type=f32) + db2_ref[...]
    d2 = jnp.maximum(d2, 0.0)
    xhat_ref[...] = jnp.dot(d2.astype(bf16), dw3_ref[...], preferred_element_type=f32) + db3_ref[...]


# ------------------------- parameters -------------------------

def init_params(key, input_dim, hidden_dim, latent_dim):
    """Deterministic synthetic parameters in the logical (unpadded) layout,
    weights stored (in_features, out_features)."""
    half = hidden_dim // 2
    shapes = {
        "w1": (input_dim, hidden_dim),        "b1": (hidden_dim,),
        "w2": (hidden_dim, half),             "b2": (half,),
        "wh": (half, 2 * latent_dim),         "bh": (2 * latent_dim,),
        "dw1": (latent_dim + 1, half),        "db1": (half,),
        "dw2": (half, hidden_dim),            "db2": (hidden_dim,),
        "dw3": (hidden_dim, input_dim - 1),   "db3": (input_dim - 1,),
    }
    params = {}
    keys = jax.random.split(key, len(shapes))
    for k, (name, shp) in zip(keys, shapes.items()):
        params[name] = (0.05 * jax.random.normal(k, shp)).astype(jnp.float32)
    return params


def _pad2(a, rows, cols, dtype=jnp.float32):
    out = jnp.zeros((rows, cols), jnp.float32)
    out = out.at[:a.shape[0], :a.shape[1]].set(a.astype(jnp.float32))
    return out.astype(dtype)


def pack_params(params, input_dim, hidden_dim, latent_dim):
    """Pad every feature axis to a multiple of 128 lanes.  Matmul weights -> bf16,
    biases -> f32.  Zero padding keeps the real lanes exact through matmuls / bias-adds /
    ReLUs; the only non-padding rounding is the bf16 cast of the weights themselves."""
    half = hidden_dim // 2
    in_x = input_dim - 1
    IN_PAD = _round_up(input_dim, LANE)          # x lanes + the folded y lane
    H1_PAD = _round_up(hidden_dim, LANE)
    H2_PAD = _round_up(half, LANE)
    MU_PAD = _round_up(latent_dim, LANE)
    Z_PAD = _round_up(latent_dim + 1, LANE)      # z lanes + the folded y lane
    OUT_PAD = _round_up(in_x, LANE)
    assert Z_PAD == MU_PAD, "y lane must fit inside the mu/logvar slab width"

    p = params
    # Head weight: mu columns in lanes [0, L), logvar columns in lanes [MU_PAD, MU_PAD+L).
    # Keeping the padding lanes exactly zero is what makes the in-kernel z-slab exact.
    wh = jnp.zeros((H2_PAD, 2 * MU_PAD), jnp.float32)
    wh = wh.at[:half, :latent_dim].set(p["wh"][:, :latent_dim])
    wh = wh.at[:half, MU_PAD:MU_PAD + latent_dim].set(p["wh"][:, latent_dim:])
    bh = jnp.zeros((1, 2 * MU_PAD), jnp.float32)
    bh = bh.at[0, :latent_dim].set(p["bh"][:latent_dim])
    bh = bh.at[0, MU_PAD:MU_PAD + latent_dim].set(p["bh"][latent_dim:])

    packed = {
        # encoder: original W1 already has the y weight as its last row (t = cat([x, y]))
        "w1": _pad2(p["w1"], IN_PAD, H1_PAD, jnp.bfloat16),
        "b1": _pad2(p["b1"][None, :], 1, H1_PAD),
        "w2": _pad2(p["w2"], H1_PAD, H2_PAD, jnp.bfloat16),
        "b2": _pad2(p["b2"][None, :], 1, H2_PAD),
        "wh": wh.astype(jnp.bfloat16),
        "bh": bh,
        # decoder: original dW1 already has the y weight as its last row (cat([z, y]))
        "dw1": _pad2(p["dw1"], Z_PAD, H2_PAD, jnp.bfloat16),
        "db1": _pad2(p["db1"][None, :], 1, H2_PAD),
        "dw2": _pad2(p["dw2"], H2_PAD, H1_PAD, jnp.bfloat16),
        "db2": _pad2(p["db2"][None, :], 1, H1_PAD),
        "dw3": _pad2(p["dw3"], H1_PAD, OUT_PAD, jnp.bfloat16),
        "db3": _pad2(p["db3"][None, :], 1, OUT_PAD),
    }
    return packed


# ------------------------- batch tiling & input packing -------------------------

def batch_tiling(B, tb_max=1024):
    """Sublane-aligned batch tile.  Large tiles amortize the ~0.35 us per-grid-step
    overhead; when the batch allows it we force >= 2 grid steps so the 'parallel' grid
    axis can actually be sharded across both v7x TensorCores."""
    B8 = _round_up(B, 8)
    TB = min(tb_max, max(8, _round_up(pl.cdiv(B8, 2), 8)))
    B_pad = _round_up(B8, TB)
    return TB, B_pad


def prepare_inputs(x, y, eps, *, input_dim, latent_dim, tb_max=1024):
    """One-time (outside the hot path) packing of inputs into lane-dense bf16 slabs:
         x_slab   = [x   | y | 0 ...]   (B_pad, IN_PAD)
         eps_slab = [eps | y | 0 ...]   (B_pad, Z_PAD)   (y rides at lane `latent_dim`)"""
    B, in_x = x.shape
    IN_PAD = _round_up(input_dim, LANE)
    Z_PAD = _round_up(latent_dim + 1, LANE)
    TB, B_pad = batch_tiling(B, tb_max)

    x_slab = jnp.zeros((B_pad, IN_PAD), jnp.float32)
    x_slab = x_slab.at[:B, :in_x].set(x).at[:B, in_x].set(y[:, 0])
    eps_slab = jnp.zeros((B_pad, Z_PAD), jnp.float32)
    eps_slab = eps_slab.at[:B, :latent_dim].set(eps).at[:B, latent_dim].set(y[:, 0])
    return x_slab.astype(jnp.bfloat16), eps_slab.astype(jnp.bfloat16), TB


# ------------------------- pallas wrapper -------------------------

def vae_forward(x_slab, eps_slab, packed, *, latent_dim, tb):
    """x_slab: (B_pad, IN_PAD) bf16, eps_slab: (B_pad, Z_PAD) bf16 from prepare_inputs.
    Returns (xhat_pad (B_pad, OUT_PAD) f32, head_pad (B_pad, 2*MU_PAD) f32)."""
    B_pad, IN_PAD = x_slab.shape
    Z_PAD = eps_slab.shape[1]
    MU_PAD = packed["wh"].shape[1] // 2
    OUT_PAD = packed["dw3"].shape[1]
    assert B_pad % tb == 0 and Z_PAD == MU_PAD

    grid = (B_pad // tb,)

    def row_spec(feat):
        return pl.BlockSpec((tb, feat), lambda i: (i, 0))

    def full_spec(arr):
        # Constant block index -> weight block stays VMEM-resident across grid steps.
        return pl.BlockSpec(arr.shape, lambda i: (0, 0))

    weight_names = ["w1", "b1", "w2", "b2", "wh", "bh",
                    "dw1", "db1", "dw2", "db2", "dw3", "db3"]
    weights = [packed[n] for n in weight_names]

    in_specs = [row_spec(IN_PAD), row_spec(Z_PAD)] + [full_spec(w) for w in weights]
    out_specs = (row_spec(OUT_PAD), row_spec(2 * MU_PAD))
    out_shapes = (jax.ShapeDtypeStruct((B_pad, OUT_PAD), jnp.float32),
                  jax.ShapeDtypeStruct((B_pad, 2 * MU_PAD), jnp.float32))

    kernel = functools.partial(vae_kernel, mu_pad=MU_PAD)
    xhat_pad, head_pad = pl.pallas_call(
        kernel,
        grid=grid,
        in_specs=in_specs,
        out_specs=out_specs,
        out_shape=out_shapes,
        compiler_params=pltpu.CompilerParams(
            dimension_semantics=("parallel",),          # batch tiles over both v7x TCs
            vmem_limit_bytes=64 * 1024 * 1024),
    )(x_slab, eps_slab, *weights)
    return xhat_pad, head_pad


# ------------------------- pure-JAX reference (f32) -------------------------

def vae_forward_ref(x, y, eps, params, latent_dim):
    t = jnp.concatenate([x, y], axis=-1)
    h1 = jnp.maximum(t @ params["w1"] + params["b1"], 0.0)
    h2 = jnp.maximum(h1 @ params["w2"] + params["b2"], 0.0)
    zp = h2 @ params["wh"] + params["bh"]
    mu = zp[:, :latent_dim]
    logvar = zp[:, latent_dim:]
    z = mu + eps * jnp.exp(0.5 * logvar)
    zc = jnp.concatenate([z, y], axis=-1)
    d1 = jnp.maximum(zc @ params["dw1"] + params["db1"], 0.0)
    d2 = jnp.maximum(d1 @ params["dw2"] + params["db2"], 0.0)
    x_hat = d2 @ params["dw3"] + params["db3"]
    return x_hat, mu, logvar


if __name__ == "__main__":
    input_dim, hidden_dim, latent_dim = 32, 32, 8
    key = jax.random.PRNGKey(0)
    kp, kdata = jax.random.split(key)
    params = init_params(kp, input_dim, hidden_dim, latent_dim)
    packed = pack_params(params, input_dim, hidden_dim, latent_dim)
    MU_PAD = packed["wh"].shape[1] // 2

    # TODO(synk): torch.randn_like(std) has no clean in-kernel equivalent here; eps is
    # passed in explicitly (deterministic), which keeps the forward semantics identical.

    for B in (8, 300):   # single-tile batch + a batch that exercises a 2-step grid
        kx, ky, keps = jax.random.split(jax.random.fold_in(kdata, B), 3)
        x = jax.random.normal(kx, (B, input_dim - 1), dtype=jnp.float32)
        y = jax.random.normal(ky, (B, 1), dtype=jnp.float32)
        eps = jax.random.normal(keps, (B, latent_dim), dtype=jnp.float32)

        # Pad / lane-pack the inputs once, outside the kernel's hot path.
        x_slab, eps_slab, tb = prepare_inputs(
            x, y, eps, input_dim=input_dim, latent_dim=latent_dim)

        xhat_pad, head_pad = jax.block_until_ready(
            vae_forward(x_slab, eps_slab, packed, latent_dim=latent_dim, tb=tb))

        x_hat = xhat_pad[:B, :input_dim - 1]
        mu = head_pad[:B, :latent_dim]
        logvar = head_pad[:B, MU_PAD:MU_PAD + latent_dim]

        x_hat_r, mu_r, logvar_r = vae_forward_ref(x, y, eps, params, latent_dim)

        assert x_hat.shape == (B, input_dim - 1)
        assert mu.shape == (B, latent_dim) and logvar.shape == (B, latent_dim)
        # bf16 weights/inputs with f32 accumulation -> loosened tolerance vs f32 reference.
        assert jnp.allclose(x_hat, x_hat_r, atol=2e-2, rtol=2e-2)
        assert jnp.allclose(mu, mu_r, atol=2e-2, rtol=2e-2)
        assert jnp.allclose(logvar, logvar_r, atol=2e-2, rtol=2e-2)

    print("KERNEL_OK")
</pallas_src>

<mosaic_0001>
module attributes {stable_mosaic.version = 11 : i64} {
  func.func @vae_kernel(%arg0: i32, %arg1: memref<8x128xbf16, #tpu.memory_space<vmem>>, %arg2: memref<8x128xbf16, #tpu.memory_space<vmem>>, %arg3: memref<128x128xbf16, #tpu.memory_space<vmem>>, %arg4: memref<1x128xf32, #tpu.memory_space<vmem>>, %arg5: memref<128x128xbf16, #tpu.memory_space<vmem>>, %arg6: memref<1x128xf32, #tpu.memory_space<vmem>>, %arg7: memref<128x256xbf16, #tpu.memory_space<vmem>>, %arg8: memref<1x256xf32, #tpu.memory_space<vmem>>, %arg9: memref<128x128xbf16, #tpu.memory_space<vmem>>, %arg10: memref<1x128xf32, #tpu.memory_space<vmem>>, %arg11: memref<128x128xbf16, #tpu.memory_space<vmem>>, %arg12: memref<1x128xf32, #tpu.memory_space<vmem>>, %arg13: memref<128x128xbf16, #tpu.memory_space<vmem>>, %arg14: memref<1x128xf32, #tpu.memory_space<vmem>>, %arg15: memref<8x128xf32, #tpu.memory_space<vmem>>, %arg16: memref<8x256xf32, #tpu.memory_space<vmem>>) attributes {dimension_semantics = [#tpu.dimension_semantics<parallel>], iteration_bounds = array<i64: 1>, scalar_prefetch = 0 : i64, scratch_operands = 0 : i64, tpu.core_type = #tpu.core_type<tc>, window_params = [{transform_indices = @transform_0, window_bounds = array<i64: 8, 128>}, {transform_indices = @transform_1, window_bounds = array<i64: 8, 128>}, {pipeline_mode = #tpu.pipeline_mode<synchronous>, transform_indices = @transform_2, window_bounds = array<i64: 128, 128>}, {pipeline_mode = #tpu.pipeline_mode<synchronous>, transform_indices = @transform_3, window_bounds = array<i64: 1, 128>}, {pipeline_mode = #tpu.pipeline_mode<synchronous>, transform_indices = @transform_4, window_bounds = array<i64: 128, 128>}, {pipeline_mode = #tpu.pipeline_mode<synchronous>, transform_indices = @transform_5, window_bounds = array<i64: 1, 128>}, {pipeline_mode = #tpu.pipeline_mode<synchronous>, transform_indices = @transform_6, window_bounds = array<i64: 128, 256>}, {pipeline_mode = #tpu.pipeline_mode<synchronous>, transform_indices = @transform_7, window_bounds = array<i64: 1, 256>}, {pipeline_mode = #tpu.pipeline_mode<synchronous>, transform_indices = @transform_8, window_bounds = array<i64: 128, 128>}, {pipeline_mode = #tpu.pipeline_mode<synchronous>, transform_indices = @transform_9, window_bounds = array<i64: 1, 128>}, {pipeline_mode = #tpu.pipeline_mode<synchronous>, transform_indices = @transform_10, window_bounds = array<i64: 128, 128>}, {pipeline_mode = #tpu.pipeline_mode<synchronous>, transform_indices = @transform_11, window_bounds = array<i64: 1, 128>}, {pipeline_mode = #tpu.pipeline_mode<synchronous>, transform_indices = @transform_12, window_bounds = array<i64: 128, 128>}, {pipeline_mode = #tpu.pipeline_mode<synchronous>, transform_indices = @transform_13, window_bounds = array<i64: 1, 128>}, {transform_indices = @transform_14, window_bounds = array<i64: 8, 128>}, {transform_indices = @transform_15, window_bounds = array<i64: 8, 256>}]} {
    %c0 = arith.constant 0 : index
    %c0_0 = arith.constant 0 : index
    %0 = vector.load %arg1[%c0, %c0_0] : memref<8x128xbf16, #tpu.memory_space<vmem>>, vector<8x128xbf16>
    %c0_1 = arith.constant 0 : index
    %c0_2 = arith.constant 0 : index
    %1 = vector.load %arg3[%c0_1, %c0_2] : memref<128x128xbf16, #tpu.memory_space<vmem>>, vector<128x128xbf16>
    %cst = arith.constant dense<0.000000e+00> : vector<8x128xf32>
    %2 = tpu.matmul %0, %1, %cst {dimension_numbers = #tpu.dot_dimension_numbers<[1], [0], [0], [1], [0, 0, 1, 1], [], []>} : vector<8x128xbf16>, vector<128x128xbf16>, vector<8x128xf32> -> vector<8x128xf32>
    %c0_3 = arith.constant 0 : index
    %c0_4 = arith.constant 0 : index
    %3 = vector.load %arg4[%c0_3, %c0_4] : memref<1x128xf32, #tpu.memory_space<vmem>>, vector<1x128xf32>
    %4 = vector.broadcast %3 : vector<1x128xf32> to vector<8x128xf32>
    %5 = arith.addf %2, %4 : vector<8x128xf32>
    %cst_5 = arith.constant 0.000000e+00 : f32
    %6 = vector.broadcast %cst_5 : f32 to vector<8x128xf32>
    %7 = arith.maximumf %5, %6 : vector<8x128xf32>
    %8 = arith.truncf %7 : vector<8x128xf32> to vector<8x128xbf16>
    %c0_6 = arith.constant 0 : index
    %c0_7 = arith.constant 0 : index
    %9 = vector.load %arg5[%c0_6, %c0_7] : memref<128x128xbf16, #tpu.memory_space<vmem>>, vector<128x128xbf16>
    %cst_8 = arith.constant dense<0.000000e+00> : vector<8x128xf32>
    %10 = tpu.matmul %8, %9, %cst_8 {dimension_numbers = #tpu.dot_dimension_numbers<[1], [0], [0], [1], [0, 0, 1, 1], [], []>} : vector<8x128xbf16>, vector<128x128xbf16>, vector<8x128xf32> -> vector<8x128xf32>
    %c0_9 = arith.constant 0 : index
    %c0_10 = arith.constant 0 : index
    %11 = vector.load %arg6[%c0_9, %c0_10] : memref<1x128xf32, #tpu.memory_space<vmem>>, vector<1x128xf32>
    %12 = vector.broadcast %11 : vector<1x128xf32> to vector<8x128xf32>
    %13 = arith.addf %10, %12 : vector<8x128xf32>
    %cst_11 = arith.constant 0.000000e+00 : f32
    %14 = vector.broadcast %cst_11 : f32 to vector<8x128xf32>
    %15 = arith.maximumf %13, %14 : vector<8x128xf32>
    %16 = arith.truncf %15 : vector<8x128xf32> to vector<8x128xbf16>
    %c0_12 = arith.constant 0 : index
    %c0_13 = arith.constant 0 : index
    %17 = vector.load %arg7[%c0_12, %c0_13] : memref<128x256xbf16, #tpu.memory_space<vmem>>, vector<128x256xbf16>
    %cst_14 = arith.constant dense<0.000000e+00> : vector<8x256xf32>
    %18 = tpu.matmul %16, %17, %cst_14 {dimension_numbers = #tpu.dot_dimension_numbers<[1], [0], [0], [1], [0, 0, 1, 1], [], []>} : vector<8x128xbf16>, vector<128x256xbf16>, vector<8x256xf32> -> vector<8x256xf32>
    %c0_15 = arith.constant 0 : index
    %c0_16 = arith.constant 0 : index
    %19 = vector.load %arg8[%c0_15, %c0_16] : memref<1x256xf32, #tpu.memory_space<vmem>>, vector<1x256xf32>
    %20 = vector.broadcast %19 : vector<1x256xf32> to vector<8x256xf32>
    %21 = arith.addf %18, %20 : vector<8x256xf32>
    %c0_17 = arith.constant 0 : index
    %c0_18 = arith.constant 0 : index
    %22 = vector.load %arg16[%c0_17, %c0_18] : memref<8x256xf32, #tpu.memory_space<vmem>>, vector<8x256xf32>
    tpu.vector_store %arg16[%c0_17, %c0_18], %21 {strides = array<i32>} : memref<8x256xf32, #tpu.memory_space<vmem>>, vector<8x256xf32>,
    %23 = vector.extract_strided_slice %21 {offsets = [0, 0], sizes = [8, 128], strides = [1, 1]} : vector<8x256xf32> to vector<8x128xf32>
    %24 = vector.extract_strided_slice %21 {offsets = [0, 128], sizes = [8, 128], strides = [1, 1]} : vector<8x256xf32> to vector<8x128xf32>
    %c0_19 = arith.constant 0 : index
    %c0_20 = arith.constant 0 : index
    %25 = vector.load %arg2[%c0_19, %c0_20] : memref<8x128xbf16, #tpu.memory_space<vmem>>, vector<8x128xbf16>
    %26 = arith.extf %25 : vector<8x128xbf16> to vector<8x128xf32>
    %cst_21 = arith.constant 5.000000e-01 : f32
    %27 = vector.broadcast %cst_21 : f32 to vector<8x128xf32>
    %28 = arith.mulf %27, %24 : vector<8x128xf32>
    %29 = math.exp %28 : vector<8x128xf32>
    %30 = arith.mulf %26, %29 : vector<8x128xf32>
    %31 = arith.addf %23, %30 : vector<8x128xf32>
    %32 = arith.truncf %31 : vector<8x128xf32> to vector<8x128xbf16>
    %c0_22 = arith.constant 0 : index
    %c0_23 = arith.constant 0 : index
    %33 = vector.load %arg9[%c0_22, %c0_23] : memref<128x128xbf16, #tpu.memory_space<vmem>>, vector<128x128xbf16>
    %cst_24 = arith.constant dense<0.000000e+00> : vector<8x128xf32>
    %34 = tpu.matmul %32, %33, %cst_24 {dimension_numbers = #tpu.dot_dimension_numbers<[1], [0], [0], [1], [0, 0, 1, 1], [], []>} : vector<8x128xbf16>, vector<128x128xbf16>, vector<8x128xf32> -> vector<8x128xf32>
    %c0_25 = arith.constant 0 : index
    %c0_26 = arith.constant 0 : index
    %35 = vector.load %arg10[%c0_25, %c0_26] : memref<1x128xf32, #tpu.memory_space<vmem>>, vector<1x128xf32>
    %36 = vector.broadcast %35 : vector<1x128xf32> to vector<8x128xf32>
    %37 = arith.addf %34, %36 : vector<8x128xf32>
    %cst_27 = arith.constant 0.000000e+00 : f32
    %38 = vector.broadcast %cst_27 : f32 to vector<8x128xf32>
    %39 = arith.maximumf %37, %38 : vector<8x128xf32>
    %40 = arith.truncf %39 : vector<8x128xf32> to vector<8x128xbf16>
    %c0_28 = arith.constant 0 : index
    %c0_29 = arith.constant 0 : index
    %41 = vector.load %arg11[%c0_28, %c0_29] : memref<128x128xbf16, #tpu.memory_space<vmem>>, vector<128x128xbf16>
    %cst_30 = arith.constant dense<0.000000e+00> : vector<8x128xf32>
    %42 = tpu.matmul %40, %41, %cst_30 {dimension_numbers = #tpu.dot_dimension_numbers<[1], [0], [0], [1], [0, 0, 1, 1], [], []>} : vector<8x128xbf16>, vector<128x128xbf16>, vector<8x128xf32> -> vector<8x128xf32>
    %c0_31 = arith.constant 0 : index
    %c0_32 = arith.constant 0 : index
    %43 = vector.load %arg12[%c0_31, %c0_32] : memref<1x128xf32, #tpu.memory_space<vmem>>, vector<1x128xf32>
    %44 = vector.broadcast %43 : vector<1x128xf32> to vector<8x128xf32>
    %45 = arith.addf %42, %44 : vector<8x128xf32>
    %cst_33 = arith.constant 0.000000e+00 : f32
    %46 = vector.broadcast %cst_33 : f32 to vector<8x128xf32>
    %47 = arith.maximumf %45, %46 : vector<8x128xf32>
    %48 = arith.truncf %47 : vector<8x128xf32> to vector<8x128xbf16>
    %c0_34 = arith.constant 0 : index
    %c0_35 = arith.constant 0 : index
    %49 = vector.load %arg13[%c0_34, %c0_35] : memref<128x128xbf16, #tpu.memory_space<vmem>>, vector<128x128xbf16>
    %cst_36 = arith.constant dense<0.000000e+00> : vector<8x128xf32>
    %50 = tpu.matmul %48, %49, %cst_36 {dimension_numbers = #tpu.dot_dimension_numbers<[1], [0], [0], [1], [0, 0, 1, 1], [], []>} : vector<8x128xbf16>, vector<128x128xbf16>, vector<8x128xf32> -> vector<8x128xf32>
    %c0_37 = arith.constant 0 : index
    %c0_38 = arith.constant 0 : index
    %51 = vector.load %arg14[%c0_37, %c0_38] : memref<1x128xf32, #tpu.memory_space<vmem>>, vector<1x128xf32>
    %52 = vector.broadcast %51 : vector<1x128xf32> to vector<8x128xf32>
    %53 = arith.addf %50, %52 : vector<8x128xf32>
    %c0_39 = arith.constant 0 : index
    %c0_40 = arith.constant 0 : index
    %54 = vector.load %arg15[%c0_39, %c0_40] : memref<8x128xf32, #tpu.memory_space<vmem>>, vector<8x128xf32>
    tpu.vector_store %arg15[%c0_39, %c0_40], %53 {strides = array<i32>} : memref<8x128xf32, #tpu.memory_space<vmem>>, vector<8x128xf32>,
    return
  }
  func.func @transform_0(%arg0: i32) -> (i32, i32) {
    %c0_i32 = arith.constant 0 : i32
    %c0_i32_0 = arith.constant 0 : i32
    return %arg0, %c0_i32 : i32, i32
  }
  func.func @transform_1(%arg0: i32) -> (i32, i32) {
    %c0_i32 = arith.constant 0 : i32
    %c0_i32_0 = arith.constant 0 : i32
    return %arg0, %c0_i32 : i32, i32
  }
  func.func @transform_2(%arg0: i32) -> (i32, i32) {
    %c0_i32 = arith.constant 0 : i32
    %c0_i32_0 = arith.constant 0 : i32
    %c0_i32_1 = arith.constant 0 : i32
    return %c0_i32, %c0_i32_0 : i32, i32
  }
  func.func @transform_3(%arg0: i32) -> (i32, i32) {
    %c0_i32 = arith.constant 0 : i32
    %c0_i32_0 = arith.constant 0 : i32
    %c0_i32_1 = arith.constant 0 : i32
    return %c0_i32, %c0_i32_0 : i32, i32
  }
  func.func @transform_4(%arg0: i32) -> (i32, i32) {
    %c0_i32 = arith.constant 0 : i32
    %c0_i32_0 = arith.constant 0 : i32
    %c0_i32_1 = arith.constant 0 : i32
    return %c0_i32, %c0_i32_0 : i32, i32
  }
  func.func @transform_5(%arg0: i32) -> (i32, i32) {
    %c0_i32 = arith.constant 0 : i32
    %c0_i32_0 = arith.constant 0 : i32
    %c0_i32_1 = arith.constant 0 : i32
    return %c0_i32, %c0_i32_0 : i32, i32
  }
  func.func @transform_6(%arg0: i32) -> (i32, i32) {
    %c0_i32 = arith.constant 0 : i32
    %c0_i32_0 = arith.constant 0 : i32
    %c0_i32_1 = arith.constant 0 : i32
    return %c0_i32, %c0_i32_0 : i32, i32
  }
  func.func @transform_7(%arg0: i32) -> (i32, i32) {
    %c0_i32 = arith.constant 0 : i32
    %c0_i32_0 = arith.constant 0 : i32
    %c0_i32_1 = arith.constant 0 : i32
    return %c0_i32, %c0_i32_0 : i32, i32
  }
  func.func @transform_8(%arg0: i32) -> (i32, i32) {
    %c0_i32 = arith.constant 0 : i32
    %c0_i32_0 = arith.constant 0 : i32
    %c0_i32_1 = arith.constant 0 : i32
    return %c0_i32, %c0_i32_0 : i32, i32
  }
  func.func @transform_9(%arg0: i32) -> (i32, i32) {
    %c0_i32 = arith.constant 0 : i32
    %c0_i32_0 = arith.constant 0 : i32
    %c0_i32_1 = arith.constant 0 : i32
    return %c0_i32, %c0_i32_0 : i32, i32
  }
  func.func @transform_10(%arg0: i32) -> (i32, i32) {
    %c0_i32 = arith.constant 0 : i32
    %c0_i32_0 = arith.constant 0 : i32
    %c0_i32_1 = arith.constant 0 : i32
    return %c0_i32, %c0_i32_0 : i32, i32
  }
  func.func @transform_11(%arg0: i32) -> (i32, i32) {
    %c0_i32 = arith.constant 0 : i32
    %c0_i32_0 = arith.constant 0 : i32
    %c0_i32_1 = arith.constant 0 : i32
    return %c0_i32, %c0_i32_0 : i32, i32
  }
  func.func @transform_12(%arg0: i32) -> (i32, i32) {
    %c0_i32 = arith.constant 0 : i32
    %c0_i32_0 = arith.constant 0 : i32
    %c0_i32_1 = arith.constant 0 : i32
    return %c0_i32, %c0_i32_0 : i32, i32
  }
  func.func @transform_13(%arg0: i32) -> (i32, i32) {
    %c0_i32 = arith.constant 0 : i32
    %c0_i32_0 = arith.constant 0 : i32
    %c0_i32_1 = arith.constant 0 : i32
    return %c0_i32, %c0_i32_0 : i32, i32
  }
  func.func @transform_14(%arg0: i32) -> (i32, i32) {
    %c0_i32 = arith.constant 0 : i32
    %c0_i32_0 = arith.constant 0 : i32
    return %arg0, %c0_i32 : i32, i32
  }
  func.func @transform_15(%arg0: i32) -> (i32, i32) {
    %c0_i32 = arith.constant 0 : i32
    %c0_i32_0 = arith.constant 0 : i32
    return %arg0, %c0_i32 : i32, i32
  }
}

</mosaic_0001>

<llo_original>
// kernel: tpu_custom_call.1
$region0: #{tpu_custom_call.1}
  #allocation0 [shape = 'u32[]', space=smem, size = 0x4, offset = 0x4, fixed_abs, tag = 'smem constant byte address 0x4 - core index']
  #allocation1 [shape = 'u32[72,128]{1,0:T(1,128)}', space=vmem, size = 0x9000, scoped, tag = 'internal scratch']
  %s0 = inlined_call_operand.hbm [shape: bf16[8,128], index: 0, kind: input, shape index: {}]
  %s1 = inlined_call_operand.hbm [shape: bf16[8,128], index: 1, kind: input, shape index: {}]
  %s2 = inlined_call_operand.hbm [shape: bf16[128,128], index: 2, kind: input, shape index: {}]
  %s3 = inlined_call_operand.vmem [shape: f32[1,128], index: 3, kind: input, shape index: {}]
  %s4 = inlined_call_operand.hbm [shape: bf16[128,128], index: 4, kind: input, shape index: {}]
  %s5 = inlined_call_operand.vmem [shape: f32[1,128], index: 5, kind: input, shape index: {}]
  %s6 = inlined_call_operand.hbm [shape: bf16[128,256], index: 6, kind: input, shape index: {}]
  %s7 = inlined_call_operand.vmem [shape: f32[1,256], index: 7, kind: input, shape index: {}]
  %s8 = inlined_call_operand.hbm [shape: bf16[128,128], index: 8, kind: input, shape index: {}]
  %s9 = inlined_call_operand.vmem [shape: f32[1,128], index: 9, kind: input, shape index: {}]
  %s10 = inlined_call_operand.hbm [shape: bf16[128,128], index: 10, kind: input, shape index: {}]
  %s11 = inlined_call_operand.vmem [shape: f32[1,128], index: 11, kind: input, shape index: {}]
  %s12 = inlined_call_operand.hbm [shape: bf16[128,128], index: 12, kind: input, shape index: {}]
  %s13 = inlined_call_operand.vmem [shape: f32[1,128], index: 13, kind: input, shape index: {}]
  %s14 = inlined_call_operand.hbm [shape: f32[8,128], index: 14, kind: output, shape index: {0}]
  %s15 = inlined_call_operand.hbm [shape: f32[8,256], index: 15, kind: output, shape index: {1}]
  %16 = xla_tuple %s14, %s15
  %s17 = sld [smem:[#allocation0]]
  $region106: #{tpu_custom_call.1} parent=0
    _
  %s19 = ssub.s32 1, %s17
  %s20 = scalar_select 0, %s19, %s17
  $region1: #{tpu_custom_call.1} parent=0
    #allocation2 [shape = 'u8[2048]{0}', space=vmem, size = 0x800, scoped, tag = 'input window, operand 0, single buffered']
    #allocation3 [shape = 's32[1]{0}', space=sflag, size = 0x4, scoped, tag = 'scoped memory for tpu_custom_call.1']
    #allocation4 [shape = 's32[1]{0}', space=sflag, size = 0x4, scoped, tag = 'scoped memory for tpu_custom_call.1']
    #allocation5 [shape = 'u8[2048]{0}', space=vmem, size = 0x800, scoped, tag = 'input window, operand 1, single buffered']
    #allocation6 [shape = 's32[1]{0}', space=sflag, size = 0x4, scoped, tag = 'scoped memory for tpu_custom_call.1']
    #allocation7 [shape = 'u8[32768]{0}', space=vmem, size = 0x8000, scoped, tag = 'input window, operand 2, single buffered']
    #allocation8 [shape = 'u8[32768]{0}', space=vmem, size = 0x8000, scoped, tag = 'input window, operand 4, single buffered']
    #allocation9 [shape = 's32[1]{0}', space=sflag, size = 0x4, scoped, tag = 'scoped memory for tpu_custom_call.1']
    #allocation10 [shape = 'u8[65536]{0}', space=vmem, size = 0x10000, scoped, tag = 'input window, operand 6, single buffered']
    #allocation11 [shape = 'u8[32768]{0}', space=vmem, size = 0x8000, scoped, tag = 'input window, operand 8, single buffered']
    #allocation12 [shape = 's32[1]{0}', space=sflag, size = 0x4, scoped, tag = 'scoped memory for tpu_custom_call.1']
    #allocation13 [shape = 'u8[32768]{0}', space=vmem, size = 0x8000, scoped, tag = 'input window, operand 10, single buffered']
    #allocation14 [shape = 'u8[32768]{0}', space=vmem, size = 0x8000, scoped, tag = 'input window, operand 12, single buffered']
    #allocation15 [shape = 's32[1]{0}', space=sflag, size = 0x4, scoped, tag = 'scoped memory for tpu_custom_call.1']
    #allocation16 [shape = 'u8[4096]{0}', space=vmem, size = 0x1000, scoped, tag = 'output window, operand 0, single buffered']
    #allocation17 [shape = 'u8[8192]{0}', space=vmem, size = 0x2000, scoped, tag = 'output window, operand 1, single buffered']
    #allocation18 [shape = 's32[1]{0}', space=sflag, size = 0x4, scoped, tag = 'scoped memory for tpu_custom_call.1']
    %21 = vsyncpa [#allocation3], 0
    %22 = vsyncpa [#allocation6], 0
    %23 = vsyncpa [#allocation9], 0
    %24 = vsyncpa [#allocation12], 0
    %25 = vsyncpa [#allocation15], 0
    %26 = vsyncpa [#allocation4], 0
    %27 = vsyncpa [#allocation18], 0
    // Predicated region
    $region2: #{tpu_custom_call.1} parent=1 // pred_check
      _
    $region3: #{tpu_custom_call.1} parent=1 // pred_check_branch
      %29 = sbr.rel (0) target = $region5
    $region4: #{tpu_custom_call.1} parent=1 // pred_region
      %31 = vsyncadd [#allocation3], 0
      %s33 = sshll.u32 %s0, 4
      %s34 = int_to_ptr.hbm [resolvable:$true] %s33
      %s35 = sshll.u32 [#allocation2], 4
      %s36 = int_to_ptr.vmem [resolvable:$true] %s35
      %38 = dma.hbm_to_vmem [thread:$0]  %s34, 64, %s36, [#allocation3]
    $region5: #{tpu_custom_call.1} parent=1 // pred_fallthru
      _
    // Predicated region
    $region6: #{tpu_custom_call.1} parent=1 // pred_check
      _
    $region7: #{tpu_custom_call.1} parent=1 // pred_check_branch
      %40 = sbr.rel (0) target = $region9
    $region8: #{tpu_custom_call.1} parent=1 // pred_region
      %42 = vsyncadd [#allocation6], 0
      %s44 = sshll.u32 %s1, 4
      %s45 = int_to_ptr.hbm [resolvable:$true] %s44
      %s46 = sshll.u32 [#allocation5], 4
      %s47 = int_to_ptr.vmem [resolvable:$true] %s46
      %49 = dma.hbm_to_vmem [thread:$0]  %s45, 64, %s47, [#allocation6]
    $region9: #{tpu_custom_call.1} parent=1 // pred_fallthru
      _
    // Predicated region
    $region10: #{tpu_custom_call.1} parent=1 // pred_check
      _
    $region11: #{tpu_custom_call.1} parent=1 // pred_check_branch
      %51 = sbr.rel (0) target = $region13
    $region12: #{tpu_custom_call.1} parent=1 // pred_region
      %53 = vsyncadd [#allocation6], 0
      %s54 = sshll.u32 %s2, 4
      %s55 = int_to_ptr.hbm [resolvable:$true] %s54
      %s56 = sshll.u32 [#allocation7], 4
      %s57 = int_to_ptr.vmem [resolvable:$true] %s56
      %62 = dma.hbm_to_vmem [thread:$0]  %s55, 1024, %s57, [#allocation6], 64, 64, 4
    $region13: #{tpu_custom_call.1} parent=1 // pred_fallthru
      _
    // Predicated region
    $region14: #{tpu_custom_call.1} parent=1 // pred_check
      _
    $region15: #{tpu_custom_call.1} parent=1 // pred_check_branch
      %64 = sbr.rel (0) target = $region17
    $region16: #{tpu_custom_call.1} parent=1 // pred_region
      _
    $region17: #{tpu_custom_call.1} parent=1 // pred_fallthru
      _
    // Predicated region
    $region18: #{tpu_custom_call.1} parent=1 // pred_check
      _
    $region19: #{tpu_custom_call.1} parent=1 // pred_check_branch
      %66 = sbr.rel (0) target = $region21
    $region20: #{tpu_custom_call.1} parent=1 // pred_region
      %68 = vsyncadd [#allocation9], 0
      %s69 = sshll.u32 %s4, 4
      %s70 = int_to_ptr.hbm [resolvable:$true] %s69
      %s71 = sshll.u32 [#allocation8], 4
      %s72 = int_to_ptr.vmem [resolvable:$true] %s71
      %77 = dma.hbm_to_vmem [thread:$0]  %s70, 1024, %s72, [#allocation9], 64, 64, 4
    $region21: #{tpu_custom_call.1} parent=1 // pred_fallthru
      _
    // Predicated region
    $region22: #{tpu_custom_call.1} parent=1 // pred_check
      _
    $region23: #{tpu_custom_call.1} parent=1 // pred_check_branch
      %79 = sbr.rel (0) target = $region25
    $region24: #{tpu_custom_call.1} parent=1 // pred_region
      _
    $region25: #{tpu_custom_call.1} parent=1 // pred_fallthru
      _
    // Predicated region
    $region26: #{tpu_custom_call.1} parent=1 // pred_check
      _
    $region27: #{tpu_custom_call.1} parent=1 // pred_check_branch
      %81 = sbr.rel (0) target = $region29
    $region28: #{tpu_custom_call.1} parent=1 // pred_region
      %83 = vsyncadd [#allocation9], 0
      %s84 = sshll.u32 %s6, 4
      %s85 = int_to_ptr.hbm [resolvable:$true] %s84
      %s86 = sshll.u32 [#allocation10], 4
      %s87 = int_to_ptr.vmem [resolvable:$true] %s86
      %92 = dma.hbm_to_vmem [thread:$0]  %s85, 2048, %s87, [#allocation9], 128, 128, 8
    $region29: #{tpu_custom_call.1} parent=1 // pred_fallthru
      _
    // Predicated region
    $region30: #{tpu_custom_call.1} parent=1 // pred_check
      _
    $region31: #{tpu_custom_call.1} parent=1 // pred_check_branch
      %94 = sbr.rel (0) target = $region33
    $region32: #{tpu_custom_call.1} parent=1 // pred_region
      _
    $region33: #{tpu_custom_call.1} parent=1 // pred_fallthru
      _
    // Predicated region
    $region34: #{tpu_custom_call.1} parent=1 // pred_check
      _
    $region35: #{tpu_custom_call.1} parent=1 // pred_check_branch
      %96 = sbr.rel (0) target = $region37
    $region36: #{tpu_custom_call.1} parent=1 // pred_region
      %98 = vsyncadd [#allocation12], 0
      %s99 = sshll.u32 %s8, 4
      %s100 = int_to_ptr.hbm [resolvable:$true] %s99
      %s101 = sshll.u32 [#allocation11], 4
      %s102 = int_to_ptr.vmem [resolvable:$true] %s101
      %107 = dma.hbm_to_vmem [thread:$0]  %s100, 1024, %s102, [#allocation12], 64, 64, 4
    $region37: #{tpu_custom_call.1} parent=1 // pred_fallthru
      _
    // Predicated region
    $region38: #{tpu_custom_call.1} parent=1 // pred_check
      _
    $region39: #{tpu_custom_call.1} parent=1 // pred_check_branch
      %109 = sbr.rel (0) target = $region41
    $region40: #{tpu_custom_call.1} parent=1 // pred_region
      _
    $region41: #{tpu_custom_call.1} parent=1 // pred_fallthru
      _
    // Predicated region
    $region42: #{tpu_custom_call.1} parent=1 // pred_check
      _
    $region43: #{tpu_custom_call.1} parent=1 // pred_check_branch
      %111 = sbr.rel (0) target = $region45
    $region44: #{tpu_custom_call.1} parent=1 // pred_region
      %113 = vsyncadd [#allocation12], 0
      %s114 = sshll.u32 %s10, 4
      %s115 = int_to_ptr.hbm [resolvable:$true] %s114
      %s116 = sshll.u32 [#allocation13], 4
      %s117 = int_to_ptr.vmem [resolvable:$true] %s116
      %122 = dma.hbm_to_vmem [thread:$0]  %s115, 1024, %s117, [#allocation12], 64, 64, 4
    $region45: #{tpu_custom_call.1} parent=1 // pred_fallthru
      _
    // Predicated region
    $region46: #{tpu_custom_call.1} parent=1 // pred_check
      _
    $region47: #{tpu_custom_call.1} parent=1 // pred_check_branch
      %124 = sbr.rel (0) target = $region49
    $region48: #{tpu_custom_call.1} parent=1 // pred_region
      _
    $region49: #{tpu_custom_call.1} parent=1 // pred_fallthru
      _
    // Predicated region
    $region50: #{tpu_custom_call.1} parent=1 // pred_check
      _
    $region51: #{tpu_custom_call.1} parent=1 // pred_check_branch
      %126 = sbr.rel (0) target = $region53
    $region52: #{tpu_custom_call.1} parent=1 // pred_region
      %128 = vsyncadd [#allocation15], 0
      %s129 = sshll.u32 %s12, 4
      %s130 = int_to_ptr.hbm [resolvable:$true] %s129
      %s131 = sshll.u32 [#allocation14], 4
      %s132 = int_to_ptr.vmem [resolvable:$true] %s131
      %137 = dma.hbm_to_vmem [thread:$0]  %s130, 1024, %s132, [#allocation15], 64, 64, 4
    $region53: #{tpu_custom_call.1} parent=1 // pred_fallthru
      _
    // Predicated region
    $region54: #{tpu_custom_call.1} parent=1 // pred_check
      _
    $region55: #{tpu_custom_call.1} parent=1 // pred_check_branch
      %139 = sbr.rel (0) target = $region57
    $region56: #{tpu_custom_call.1} parent=1 // pred_region
      _
    $region57: #{tpu_custom_call.1} parent=1 // pred_fallthru
      _
    // Predicated region
    $region58: #{tpu_custom_call.1} parent=1 // pred_check
      _
    $region59: #{tpu_custom_call.1} parent=1 // pred_check_branch
      %141 = sbr.rel (0) target = $region61
    $region60: #{tpu_custom_call.1} parent=1 // pred_region
      %143 = dma.done [#allocation3], 64
    $region61: #{tpu_custom_call.1} parent=1 // pred_fallthru
      _
    // Predicated region
    $region62: #{tpu_custom_call.1} parent=1 // pred_check
      _
    $region63: #{tpu_custom_call.1} parent=1 // pred_check_branch
      %145 = sbr.rel (0) target = $region65
    $region64: #{tpu_custom_call.1} parent=1 // pred_region
      %147 = dma.done [#allocation6], 64
    $region65: #{tpu_custom_call.1} parent=1 // pred_fallthru
      _
    // Predicated region
    $region66: #{tpu_custom_call.1} parent=1 // pred_check
      _
    $region67: #{tpu_custom_call.1} parent=1 // pred_check_branch
      %149 = sbr.rel (0) target = $region69
    $region68: #{tpu_custom_call.1} parent=1 // pred_region
      %151 = dma.done [#allocation6], 1024
    $region69: #{tpu_custom_call.1} parent=1 // pred_fallthru
      _
    // Predicated region
    $region70: #{tpu_custom_call.1} parent=1 // pred_check
      _
    $region71: #{tpu_custom_call.1} parent=1 // pred_check_branch
      %153 = sbr.rel (0) target = $region73
    $region72: #{tpu_custom_call.1} parent=1 // pred_region
      %155 = dma.done [#allocation9], 1024
    $region73: #{tpu_custom_call.1} parent=1 // pred_fallthru
      _
    // Predicated region
    $region74: #{tpu_custom_call.1} parent=1 // pred_check
      _
    $region75: #{tpu_custom_call.1} parent=1 // pred_check_branch
      %157 = sbr.rel (0) target = $region77
    $region76: #{tpu_custom_call.1} parent=1 // pred_region
      %159 = dma.done [#allocation9], 2048
    $region77: #{tpu_custom_call.1} parent=1 // pred_fallthru
      _
    // Predicated region
    $region78: #{tpu_custom_call.1} parent=1 // pred_check
      _
    $region79: #{tpu_custom_call.1} parent=1 // pred_check_branch
      %161 = sbr.rel (0) target = $region81
    $region80: #{tpu_custom_call.1} parent=1 // pred_region
      %163 = dma.done [#allocation12], 1024
    $region81: #{tpu_custom_call.1} parent=1 // pred_fallthru
      _
    // Predicated region
    $region82: #{tpu_custom_call.1} parent=1 // pred_check
      _
    $region83: #{tpu_custom_call.1} parent=1 // pred_check_branch
      %165 = sbr.rel (0) target = $region85
    $region84: #{tpu_custom_call.1} parent=1 // pred_region
      %167 = dma.done [#allocation12], 1024
    $region85: #{tpu_custom_call.1} parent=1 // pred_fallthru
      _
    // Predicated region
    $region86: #{tpu_custom_call.1} parent=1 // pred_check
      _
    $region87: #{tpu_custom_call.1} parent=1 // pred_check_branch
      %169 = sbr.rel (0) target = $region89
    $region88: #{tpu_custom_call.1} parent=1 // pred_region
      %171 = dma.done [#allocation15], 1024
    $region89: #{tpu_custom_call.1} parent=1 // pred_fallthru
      _
    %v172 = vld [vmem:[#allocation2] sm:$0xf]
    %v173 = vld [vmem:[#allocation7] sm:$0xf]
    %v174 = vld [vmem:[#allocation7 + $0x4] sm:$0xf]
    %v175 = vld [vmem:[#allocation7 + $0x8] sm:$0xf]
    %v176 = vld [vmem:[#allocation7 + $0xc] sm:$0xf]
    %v177 = vld [vmem:[#allocation7 + $0x10] sm:$0xf]
    %v178 = vld [vmem:[#allocation7 + $0x14] sm:$0xf]
    %v179 = vld [vmem:[#allocation7 + $0x18] sm:$0xf]
    %v180 = vld [vmem:[#allocation7 + $0x1c] sm:$0xf]
    %v181 = vld [vmem:[#allocation7 + $0x20] sm:$0xf]
    %v182 = vld [vmem:[#allocation7 + $0x24] sm:$0xf]
    %v183 = vld [vmem:[#allocation7 + $0x28] sm:$0xf]
    %v184 = vld [vmem:[#allocation7 + $0x2c] sm:$0xf]
    %v185 = vld [vmem:[#allocation7 + $0x30] sm:$0xf]
    %v186 = vld [vmem:[#allocation7 + $0x34] sm:$0xf]
    %v187 = vld [vmem:[#allocation7 + $0x38] sm:$0xf]
    %v188 = vld [vmem:[#allocation7 + $0x3c] sm:$0xf]
    %v189 = vld [vmem:[%s3] sm:$0x1]
    %v191 = vperm.slane %v189, 0
    %v209 = vunpack.c.l.b16 %v173
    %v210 = vunpack.c.l.b16 %v174
    %v211 = vunpack.c.l.b16 %v175
    %v212 = vunpack.c.l.b16 %v176
    %v213 = vunpack.c.l.b16 %v177
    %v214 = vunpack.c.l.b16 %v178
    %v215 = vunpack.c.l.b16 %v179
    %v216 = vunpack.c.l.b16 %v180
    %v217 = vunpack.c.l.b16 %v181
    %v218 = vunpack.c.l.b16 %v182
    %v219 = vunpack.c.l.b16 %v183
    %v220 = vunpack.c.l.b16 %v184
    %v221 = vunpack.c.l.b16 %v185
    %v222 = vunpack.c.l.b16 %v186
    %v223 = vunpack.c.l.b16 %v187
    %v224 = vunpack.c.l.b16 %v188
    %v225 = vpack.c.b16 %v210, %v209
    %v226 = vpack.c.b16 %v212, %v211
    %v227 = vpack.c.b16 %v214, %v213
    %v228 = vpack.c.b16 %v216, %v215
    %v229 = vpack.c.b16 %v218, %v217
    %v230 = vpack.c.b16 %v220, %v219
    %v231 = vpack.c.b16 %v222, %v221
    %v232 = vpack.c.b16 %v224, %v223
    %241 = vmatpush.bf16.msra.mxu0 %v232
    %242 = vmatpush.bf16.msra.mxu0 %v231
    %243 = vmatpush.bf16.msra.mxu0 %v230
    %244 = vmatpush.bf16.msra.mxu0 %v229
    %245 = vmatpush.bf16.msra.mxu0 %v228
    %246 = vmatpush.bf16.msra.mxu0 %v227
    %247 = vmatpush.bf16.msra.mxu0 %v226
    %248 = vmatpush.bf16.msra.mxu0 %v225
    %249 = vmatmul.bf16.gmra.mxu0 %v172
    %v250 = vpop.f32.mrf.mxu0
    %v251 = vadd.f32 %v191, %v250
    %v252 = vpop.f32.mrf.mxu0
    %253 = vdwg.mxu0
    %v254 = vmax.f32 %v251, 0.0
    %v255 = vpack.c.bf16 %v254, %v254
    %v256 = vld [vmem:[#allocation8] sm:$0xf]
    %v257 = vld [vmem:[#allocation8 + $0x4] sm:$0xf]
    %v258 = vld [vmem:[#allocation8 + $0x8] sm:$0xf]
    %v259 = vld [vmem:[#allocation8 + $0xc] sm:$0xf]
    %v260 = vld [vmem:[#allocation8 + $0x10] sm:$0xf]
    %v261 = vld [vmem:[#allocation8 + $0x14] sm:$0xf]
    %v262 = vld [vmem:[#allocation8 + $0x18] sm:$0xf]
    %v263 = vld [vmem:[#allocation8 + $0x1c] sm:$0xf]
    %v264 = vld [vmem:[#allocation8 + $0x20] sm:$0xf]
    %v265 = vld [vmem:[#allocation8 + $0x24] sm:$0xf]
    %v266 = vld [vmem:[#allocation8 + $0x28] sm:$0xf]
    %v267 = vld [vmem:[#allocation8 + $0x2c] sm:$0xf]
    %v268 = vld [vmem:[#allocation8 + $0x30] sm:$0xf]
    %v269 = vld [vmem:[#allocation8 + $0x34] sm:$0xf]
    %v270 = vld [vmem:[#allocation8 + $0x38] sm:$0xf]
    %v271 = vld [vmem:[#allocation8 + $0x3c] sm:$0xf]
    %v272 = vld [vmem:[%s5] sm:$0x1]
    %v274 = vperm.slane %v272, 0
    %v292 = vunpack.c.l.b16 %v256
    %v293 = vunpack.c.l.b16 %v257
    %v294 = vunpack.c.l.b16 %v258
    %v295 = vunpack.c.l.b16 %v259
    %v296 = vunpack.c.l.b16 %v260
    %v297 = vunpack.c.l.b16 %v261
    %v298 = vunpack.c.l.b16 %v262
    %v299 = vunpack.c.l.b16 %v263
    %v300 = vunpack.c.l.b16 %v264
    %v301 = vunpack.c.l.b16 %v265
    %v302 = vunpack.c.l.b16 %v266
    %v303 = vunpack.c.l.b16 %v267
    %v304 = vunpack.c.l.b16 %v268
    %v305 = vunpack.c.l.b16 %v269
    %v306 = vunpack.c.l.b16 %v270
    %v307 = vunpack.c.l.b16 %v271
    %v308 = vpack.c.b16 %v293, %v292
    %v309 = vpack.c.b16 %v295, %v294
    %v310 = vpack.c.b16 %v297, %v296
    %v311 = vpack.c.b16 %v299, %v298
    %v312 = vpack.c.b16 %v301, %v300
    %v313 = vpack.c.b16 %v303, %v302
    %v314 = vpack.c.b16 %v305, %v304
    %v315 = vpack.c.b16 %v307, %v306
    %324 = vmatpush.bf16.msra.mxu0 %v315
    %325 = vmatpush.bf16.msra.mxu0 %v314
    %326 = vmatpush.bf16.msra.mxu0 %v313
    %327 = vmatpush.bf16.msra.mxu0 %v312
    %328 = vmatpush.bf16.msra.mxu0 %v311
    %329 = vmatpush.bf16.msra.mxu0 %v310
    %330 = vmatpush.bf16.msra.mxu0 %v309
    %331 = vmatpush.bf16.msra.mxu0 %v308
    %332 = vmatmul.bf16.gmra.mxu0 %v255
    %v333 = vpop.f32.mrf.mxu0
    %v334 = vadd.f32 %v274, %v333
    %v335 = vpop.f32.mrf.mxu0
    %336 = vdwg.mxu0
    %v337 = vmax.f32 %v334, 0.0
    %v338 = vpack.c.bf16 %v337, %v337
    %v339 = vld [vmem:[#allocation10] sm:$0xff]
    %v340 = vld [vmem:[#allocation10 + $0x8] sm:$0xff]
    %v341 = vld [vmem:[#allocation10 + $0x10] sm:$0xff]
    %v342 = vld [vmem:[#allocation10 + $0x18] sm:$0xff]
    %v343 = vld [vmem:[#allocation10 + $0x20] sm:$0xff]
    %v344 = vld [vmem:[#allocation10 + $0x28] sm:$0xff]
    %v345 = vld [vmem:[#allocation10 + $0x30] sm:$0xff]
    %v346 = vld [vmem:[#allocation10 + $0x38] sm:$0xff]
    %v347 = vld [vmem:[#allocation10 + $0x40] sm:$0xff]
    %v348 = vld [vmem:[#allocation10 + $0x48] sm:$0xff]
    %v349 = vld [vmem:[#allocation10 + $0x50] sm:$0xff]
    %v350 = vld [vmem:[#allocation10 + $0x58] sm:$0xff]
    %v351 = vld [vmem:[#allocation10 + $0x60] sm:$0xff]
    %v352 = vld [vmem:[#allocation10 + $0x68] sm:$0xff]
    %v353 = vld [vmem:[#allocation10 + $0x70] sm:$0xff]
    %v354 = vld [vmem:[#allocation10 + $0x78] sm:$0xff]
    %v355 = vld [vmem:[%s7] sm:$0x3]
    %v357 = vperm.slane %v355, 0
    %v358 = vperm.slane %v355, 1
    %v377 = vunpack.c.l.b16 %v339
    %v378 = vunpack.c.h.b16 %v339
    %v379 = vunpack.c.l.b16 %v340
    %v380 = vunpack.c.h.b16 %v340
    %v381 = vunpack.c.l.b16 %v341
    %v382 = vunpack.c.h.b16 %v341
    %v383 = vunpack.c.l.b16 %v342
    %v384 = vunpack.c.h.b16 %v342
    %v385 = vunpack.c.l.b16 %v343
    %v386 = vunpack.c.h.b16 %v343
    %v387 = vunpack.c.l.b16 %v344
    %v388 = vunpack.c.h.b16 %v344
    %v389 = vunpack.c.l.b16 %v345
    %v390 = vunpack.c.h.b16 %v345
    %v391 = vunpack.c.l.b16 %v346
    %v392 = vunpack.c.h.b16 %v346
    %v393 = vunpack.c.l.b16 %v347
    %v394 = vunpack.c.h.b16 %v347
    %v395 = vunpack.c.l.b16 %v348
    %v396 = vunpack.c.h.b16 %v348
    %v397 = vunpack.c.l.b16 %v349
    %v398 = vunpack.c.h.b16 %v349
    %v399 = vunpack.c.l.b16 %v350
    %v400 = vunpack.c.h.b16 %v350
    %v401 = vunpack.c.l.b16 %v351
    %v402 = vunpack.c.h.b16 %v351
    %v403 = vunpack.c.l.b16 %v352
    %v404 = vunpack.c.h.b16 %v352
    %v405 = vunpack.c.l.b16 %v353
    %v406 = vunpack.c.h.b16 %v353
    %v407 = vunpack.c.l.b16 %v354
    %v408 = vunpack.c.h.b16 %v354
    %v409 = vpack.c.b16 %v379, %v377
    %v410 = vpack.c.b16 %v380, %v378
    %v411 = vpack.c.b16 %v383, %v381
    %v412 = vpack.c.b16 %v384, %v382
    %v413 = vpack.c.b16 %v387, %v385
    %v414 = vpack.c.b16 %v388, %v386
    %v415 = vpack.c.b16 %v391, %v389
    %v416 = vpack.c.b16 %v392, %v390
    %v417 = vpack.c.b16 %v395, %v393
    %v418 = vpack.c.b16 %v396, %v394
    %v419 = vpack.c.b16 %v399, %v397
    %v420 = vpack.c.b16 %v400, %v398
    %v421 = vpack.c.b16 %v403, %v401
    %v422 = vpack.c.b16 %v404, %v402
    %v423 = vpack.c.b16 %v407, %v405
    %v424 = vpack.c.b16 %v408, %v406
    %441 = vmatpush.bf16.msra.mxu0 %v423
    %442 = vmatpush.bf16.msra.mxu0 %v421
    %443 = vmatpush.bf16.msra.mxu0 %v419
    %444 = vmatpush.bf16.msra.mxu0 %v417
    %445 = vmatpush.bf16.msra.mxu0 %v415
    %446 = vmatpush.bf16.msra.mxu0 %v413
    %447 = vmatpush.bf16.msra.mxu0 %v411
    %448 = vmatpush.bf16.msra.mxu0 %v409
    %449 = vmatmul.bf16.gmra.mxu0 %v338
    %v450 = vpop.f32.mrf.mxu0
    %v451 = vadd.f32 %v357, %v450
    %v452 = vpop.f32.mrf.mxu0
    %453 = vdwg.mxu0
    %454 = vmatpush.bf16.msra.mxu0 %v424
    %455 = vmatpush.bf16.msra.mxu0 %v422
    %456 = vmatpush.bf16.msra.mxu0 %v420
    %457 = vmatpush.bf16.msra.mxu0 %v418
    %458 = vmatpush.bf16.msra.mxu0 %v416
    %459 = vmatpush.bf16.msra.mxu0 %v414
    %460 = vmatpush.bf16.msra.mxu0 %v412
    %461 = vmatpush.bf16.msra.mxu0 %v410
    %462 = vmatmul.bf16.gmra.mxu0 %v338
    %v463 = vpop.f32.mrf.mxu0
    %v464 = vadd.f32 %v358, %v463
    %v465 = vpop.f32.mrf.mxu0
    %466 = vdwg.mxu0
    %467 = vst [vmem:[#allocation17] sm:$0xff] %v451
    %468 = vst [vmem:[#allocation17 + $0x8] sm:$0xff] %v464
    %v469 = vld [vmem:[#allocation5] sm:$0xf]
    %v470 = vunpack.c.l.bf16 %v469
    %v471 = vmul.f32 %v464, 0.5
    %v472 = vmul.f32 %v471, 1.442695
    %v473 = vpow.pop %v472
    %v474 = vmul.f32 %v470, %v473
    %v475 = vadd.f32 %v451, %v474
    %v476 = vpack.c.bf16 %v475, %v475
    %v477 = vld [vmem:[#allocation11] sm:$0xf]
    %v478 = vld [vmem:[#allocation11 + $0x4] sm:$0xf]
    %v479 = vld [vmem:[#allocation11 + $0x8] sm:$0xf]
    %v480 = vld [vmem:[#allocation11 + $0xc] sm:$0xf]
    %v481 = vld [vmem:[#allocation11 + $0x10] sm:$0xf]
    %v482 = vld [vmem:[#allocation11 + $0x14] sm:$0xf]
    %v483 = vld [vmem:[#allocation11 + $0x18] sm:$0xf]
    %v484 = vld [vmem:[#allocation11 + $0x1c] sm:$0xf]
    %v485 = vld [vmem:[#allocation11 + $0x20] sm:$0xf]
    %v486 = vld [vmem:[#allocation11 + $0x24] sm:$0xf]
    %v487 = vld [vmem:[#allocation11 + $0x28] sm:$0xf]
    %v488 = vld [vmem:[#allocation11 + $0x2c] sm:$0xf]
    %v489 = vld [vmem:[#allocation11 + $0x30] sm:$0xf]
    %v490 = vld [vmem:[#allocation11 + $0x34] sm:$0xf]
    %v491 = vld [vmem:[#allocation11 + $0x38] sm:$0xf]
    %v492 = vld [vmem:[#allocation11 + $0x3c] sm:$0xf]
    %v493 = vld [vmem:[%s9] sm:$0x1]
    %v495 = vperm.slane %v493, 0
    %v513 = vunpack.c.l.b16 %v477
    %v514 = vunpack.c.l.b16 %v478
    %v515 = vunpack.c.l.b16 %v479
    %v516 = vunpack.c.l.b16 %v480
    %v517 = vunpack.c.l.b16 %v481
    %v518 = vunpack.c.l.b16 %v482
    %v519 = vunpack.c.l.b16 %v483
    %v520 = vunpack.c.l.b16 %v484
    %v521 = vunpack.c.l.b16 %v485
    %v522 = vunpack.c.l.b16 %v486
    %v523 = vunpack.c.l.b16 %v487
    %v524 = vunpack.c.l.b16 %v488
    %v525 = vunpack.c.l.b16 %v489
    %v526 = vunpack.c.l.b16 %v490
    %v527 = vunpack.c.l.b16 %v491
    %v528 = vunpack.c.l.b16 %v492
    %v529 = vpack.c.b16 %v514, %v513
    %v530 = vpack.c.b16 %v516, %v515
    %v531 = vpack.c.b16 %v518, %v517
    %v532 = vpack.c.b16 %v520, %v519
    %v533 = vpack.c.b16 %v522, %v521
    %v534 = vpack.c.b16 %v524, %v523
    %v535 = vpack.c.b16 %v526, %v525
    %v536 = vpack.c.b16 %v528, %v527
    %545 = vmatpush.bf16.msra.mxu0 %v536
    %546 = vmatpush.bf16.msra.mxu0 %v535
    %547 = vmatpush.bf16.msra.mxu0 %v534
    %548 = vmatpush.bf16.msra.mxu0 %v533
    %549 = vmatpush.bf16.msra.mxu0 %v532
    %550 = vmatpush.bf16.msra.mxu0 %v531
    %551 = vmatpush.bf16.msra.mxu0 %v530
    %552 = vmatpush.bf16.msra.mxu0 %v529
    %553 = vmatmul.bf16.gmra.mxu0 %v476
    %v554 = vpop.f32.mrf.mxu0
    %v555 = vadd.f32 %v495, %v554
    %v556 = vpop.f32.mrf.mxu0
    %557 = vdwg.mxu0
    %v558 = vmax.f32 %v555, 0.0
    %v559 = vpack.c.bf16 %v558, %v558
    %v560 = vld [vmem:[#allocation13] sm:$0xf]
    %v561 = vld [vmem:[#allocation13 + $0x4] sm:$0xf]
    %v562 = vld [vmem:[#allocation13 + $0x8] sm:$0xf]
    %v563 = vld [vmem:[#allocation13 + $0xc] sm:$0xf]
    %v564 = vld [vmem:[#allocation13 + $0x10] sm:$0xf]
    %v565 = vld [vmem:[#allocation13 + $0x14] sm:$0xf]
    %v566 = vld [vmem:[#allocation13 + $0x18] sm:$0xf]
    %v567 = vld [vmem:[#allocation13 + $0x1c] sm:$0xf]
    %v568 = vld [vmem:[#allocation13 + $0x20] sm:$0xf]
    %v569 = vld [vmem:[#allocation13 + $0x24] sm:$0xf]
    %v570 = vld [vmem:[#allocation13 + $0x28] sm:$0xf]
    %v571 = vld [vmem:[#allocation13 + $0x2c] sm:$0xf]
    %v572 = vld [vmem:[#allocation13 + $0x30] sm:$0xf]
    %v573 = vld [vmem:[#allocation13 + $0x34] sm:$0xf]
    %v574 = vld [vmem:[#allocation13 + $0x38] sm:$0xf]
    %v575 = vld [vmem:[#allocation13 + $0x3c] sm:$0xf]
    %v576 = vld [vmem:[%s11] sm:$0x1]
    %v578 = vperm.slane %v576, 0
    %v596 = vunpack.c.l.b16 %v560
    %v597 = vunpack.c.l.b16 %v561
    %v598 = vunpack.c.l.b16 %v562
    %v599 = vunpack.c.l.b16 %v563
    %v600 = vunpack.c.l.b16 %v564
    %v601 = vunpack.c.l.b16 %v565
    %v602 = vunpack.c.l.b16 %v566
    %v603 = vunpack.c.l.b16 %v567
    %v604 = vunpack.c.l.b16 %v568
    %v605 = vunpack.c.l.b16 %v569
    %v606 = vunpack.c.l.b16 %v570
    %v607 = vunpack.c.l.b16 %v571
    %v608 = vunpack.c.l.b16 %v572
    %v609 = vunpack.c.l.b16 %v573
    %v610 = vunpack.c.l.b16 %v574
    %v611 = vunpack.c.l.b16 %v575
    %v612 = vpack.c.b16 %v597, %v596
    %v613 = vpack.c.b16 %v599, %v598
    %v614 = vpack.c.b16 %v601, %v600
    %v615 = vpack.c.b16 %v603, %v602
    %v616 = vpack.c.b16 %v605, %v604
    %v617 = vpack.c.b16 %v607, %v606
    %v618 = vpack.c.b16 %v609, %v608
    %v619 = vpack.c.b16 %v611, %v610
    %628 = vmatpush.bf16.msra.mxu0 %v619
    %629 = vmatpush.bf16.msra.mxu0 %v618
    %630 = vmatpush.bf16.msra.mxu0 %v617
    %631 = vmatpush.bf16.msra.mxu0 %v616
    %632 = vmatpush.bf16.msra.mxu0 %v615
    %633 = vmatpush.bf16.msra.mxu0 %v614
    %634 = vmatpush.bf16.msra.mxu0 %v613
    %635 = vmatpush.bf16.msra.mxu0 %v612
    %636 = vmatmul.bf16.gmra.mxu0 %v559
    %v637 = vpop.f32.mrf.mxu0
    %v638 = vadd.f32 %v578, %v637
    %v639 = vpop.f32.mrf.mxu0
    %640 = vdwg.mxu0
    %v641 = vmax.f32 %v638, 0.0
    %v642 = vpack.c.bf16 %v641, %v641
    %v643 = vld [vmem:[#allocation14] sm:$0xf]
    %v644 = vld [vmem:[#allocation14 + $0x4] sm:$0xf]
    %v645 = vld [vmem:[#allocation14 + $0x8] sm:$0xf]
    %v646 = vld [vmem:[#allocation14 + $0xc] sm:$0xf]
    %v647 = vld [vmem:[#allocation14 + $0x10] sm:$0xf]
    %v648 = vld [vmem:[#allocation14 + $0x14] sm:$0xf]
    %v649 = vld [vmem:[#allocation14 + $0x18] sm:$0xf]
    %v650 = vld [vmem:[#allocation14 + $0x1c] sm:$0xf]
    %v651 = vld [vmem:[#allocation14 + $0x20] sm:$0xf]
    %v652 = vld [vmem:[#allocation14 + $0x24] sm:$0xf]
    %v653 = vld [vmem:[#allocation14 + $0x28] sm:$0xf]
    %v654 = vld [vmem:[#allocation14 + $0x2c] sm:$0xf]
    %v655 = vld [vmem:[#allocation14 + $0x30] sm:$0xf]
    %v656 = vld [vmem:[#allocation14 + $0x34] sm:$0xf]
    %v657 = vld [vmem:[#allocation14 + $0x38] sm:$0xf]
    %v658 = vld [vmem:[#allocation14 + $0x3c] sm:$0xf]
    %v659 = vld [vmem:[%s13] sm:$0x1]
    %v661 = vperm.slane %v659, 0
    %v679 = vunpack.c.l.b16 %v643
    %v680 = vunpack.c.l.b16 %v644
    %v681 = vunpack.c.l.b16 %v645
    %v682 = vunpack.c.l.b16 %v646
    %v683 = vunpack.c.l.b16 %v647
    %v684 = vunpack.c.l.b16 %v648
    %v685 = vunpack.c.l.b16 %v649
    %v686 = vunpack.c.l.b16 %v650
    %v687 = vunpack.c.l.b16 %v651
    %v688 = vunpack.c.l.b16 %v652
    %v689 = vunpack.c.l.b16 %v653
    %v690 = vunpack.c.l.b16 %v654
    %v691 = vunpack.c.l.b16 %v655
    %v692 = vunpack.c.l.b16 %v656
    %v693 = vunpack.c.l.b16 %v657
    %v694 = vunpack.c.l.b16 %v658
    %v695 = vpack.c.b16 %v680, %v679
    %v696 = vpack.c.b16 %v682, %v681
    %v697 = vpack.c.b16 %v684, %v683
    %v698 = vpack.c.b16 %v686, %v685
    %v699 = vpack.c.b16 %v688, %v687
    %v700 = vpack.c.b16 %v690, %v689
    %v701 = vpack.c.b16 %v692, %v691
    %v702 = vpack.c.b16 %v694, %v693
    %711 = vmatpush.bf16.msra.mxu0 %v702
    %712 = vmatpush.bf16.msra.mxu0 %v701
    %713 = vmatpush.bf16.msra.mxu0 %v700
    %714 = vmatpush.bf16.msra.mxu0 %v699
    %715 = vmatpush.bf16.msra.mxu0 %v698
    %716 = vmatpush.bf16.msra.mxu0 %v697
    %717 = vmatpush.bf16.msra.mxu0 %v696
    %718 = vmatpush.bf16.msra.mxu0 %v695
    %719 = vmatmul.bf16.gmra.mxu0 %v642
    %v720 = vpop.f32.mrf.mxu0
    %v721 = vadd.f32 %v661, %v720
    %v722 = vpop.f32.mrf.mxu0
    %723 = vdwg.mxu0
    %724 = vst [vmem:[#allocation16] sm:$0xff] %v721
    // Predicated region
    $region90: #{tpu_custom_call.1} parent=1 // pred_check
      _
    $region91: #{tpu_custom_call.1} parent=1 // pred_check_branch
      %726 = sbr.rel (0) target = $region93
    $region92: #{tpu_custom_call.1} parent=1 // pred_region
      %728 = vsyncadd [#allocation4], 0
      %s730 = sshll.u32 [#allocation16], 4
      %s731 = int_to_ptr.vmem [resolvable:$true] %s730
      %s732 = sshll.u32 %s14, 4
      %s733 = int_to_ptr.hbm [resolvable:$true] %s732
      %735 = dma.vmem_to_hbm [thread:$0]  %s731, 128, %s733, [#allocation4]
    $region93: #{tpu_custom_call.1} parent=1 // pred_fallthru
      _
    // Predicated region
    $region94: #{tpu_custom_call.1} parent=1 // pred_check
      _
    $region95: #{tpu_custom_call.1} parent=1 // pred_check_branch
      %737 = sbr.rel (0) target = $region97
    $region96: #{tpu_custom_call.1} parent=1 // pred_region
      %739 = vsyncadd [#allocation18], 0
      %s741 = sshll.u32 [#allocation17], 4
      %s742 = int_to_ptr.vmem [resolvable:$true] %s741
      %s743 = sshll.u32 %s15, 4
      %s744 = int_to_ptr.hbm [resolvable:$true] %s743
      %746 = dma.vmem_to_hbm [thread:$0]  %s742, 256, %s744, [#allocation18]
    $region97: #{tpu_custom_call.1} parent=1 // pred_fallthru
      _
    // Predicated region
    $region98: #{tpu_custom_call.1} parent=1 // pred_check
      _
    $region99: #{tpu_custom_call.1} parent=1 // pred_check_branch
      %748 = sbr.rel (0) target = $region101
    $region100: #{tpu_custom_call.1} parent=1 // pred_region
      %750 = dma.done [#allocation4], 128
    $region101: #{tpu_custom_call.1} parent=1 // pred_fallthru
      _
    // Predicated region
    $region102: #{tpu_custom_call.1} parent=1 // pred_check
      _
    $region103: #{tpu_custom_call.1} parent=1 // pred_check_branch
      %752 = sbr.rel (0) target = $region105
    $region104: #{tpu_custom_call.1} parent=1 // pred_region
      %754 = dma.done [#allocation18], 256
    $region105: #{tpu_custom_call.1} parent=1 // pred_fallthru
      _
    %755 = vsyncpa [#allocation3], 1
    %756 = vsyncpa [#allocation6], 1
    %757 = vsyncpa [#allocation9], 1
    %758 = vsyncpa [#allocation12], 1
    %759 = vsyncpa [#allocation15], 1
    %760 = vsyncpa [#allocation4], 1
    %761 = vsyncpa [#allocation18], 1

</llo_original>
